<compile_context>
chip_gen: v7x
topology: tpu7x:2x2x1
jax: 0.10.0
libtpu: 0.0.40
codegen_flags: <defaults>
</compile_context>

<pallas_src>
import jax
import jax.numpy as jnp
from jax import lax
from jax.experimental import pallas as pl
from jax.experimental.pallas import tpu as pltpu


# ---------------------------------------------------------------------------
# Sizing helpers
# ---------------------------------------------------------------------------
def _vmem_capacity_bytes():
    try:
        cap = getattr(pltpu.get_tpu_info(), "vmem_capacity_bytes", None)
        if cap:
            return int(cap)
    except Exception:
        pass
    return 64 << 20  # conservative default: v7x per-TensorCore VMEM


def _pick_tb(batch, dim, cap=1024):
    """Batch tile (multiple of 128) sized against a chip-derived VMEM budget."""
    dp = ((max(dim, 1) + 127) // 128) * 128          # lane-padded D
    row_bytes = 4 * dp * 4                            # head+tail+re_h+re_t, f32
    budget = _vmem_capacity_bytes() // 4              # gather buffers' share
    tb_max = min(cap, max(128, (budget // row_bytes) // 128 * 128))
    bp = ((batch + 127) // 128) * 128
    tb_max = min(tb_max, max(128, bp))
    # keep >= ~2 MiB of gathered bytes per grid step
    tb_min = min(tb_max, max(128, (-(-(2 << 20) // (row_bytes * 128))) * 128))
    tb = tb_max
    # aim for >= 8 grid steps (pipelining depth / 2 TCs on v7x) if batch allows
    while tb - 128 >= tb_min and -(-bp // tb) < 8:
        tb -= 128
    return tb


# ---------------------------------------------------------------------------
# Kernel
# ---------------------------------------------------------------------------
def _l2_normalize(x):
    # F.normalize(x, p=2, dim=-1): x / max(||x||_2, 1e-12)
    #   == x * min(rsqrt(sum(x^2)), 1e12)   (rsqrt runs on the EUP slot)
    inv = jnp.minimum(lax.rsqrt(jnp.sum(x * x, axis=-1, keepdims=True)),
                      jnp.float32(1e12))
    return x * inv


def _score(head, tail, re_head, re_tail):
    mix = _l2_normalize(head) * re_head - _l2_normalize(tail) * re_tail
    return -jnp.sum(jnp.abs(mix), axis=-1)  # (tb,)


def _make_fused_kernel(tb, dim, rel_contiguous):
    """Returns (kernel, scratch_shapes) gathering rows straight from HBM."""
    if rel_contiguous:
        # One contiguous (2*dim,) DMA per relation row; free static split inside.
        def kernel(h_sm, r_sm, t_sm, ent_hbm, rel_hbm, out_ref,
                   head_buf, tail_buf, rel_buf, sem):
            base = pl.program_id(0) * tb

            @pl.loop(0, tb)
            def _(j):
                row = base + j
                pltpu.make_async_copy(ent_hbm.at[h_sm[row]], head_buf.at[j],
                                      sem.at[0]).start()
                pltpu.make_async_copy(ent_hbm.at[t_sm[row]], tail_buf.at[j],
                                      sem.at[1]).start()
                pltpu.make_async_copy(rel_hbm.at[r_sm[row]], rel_buf.at[j],
                                      sem.at[2]).start()

            @pl.loop(0, tb)
            def _(j):
                pltpu.make_async_copy(ent_hbm.at[0], head_buf.at[0], sem.at[0]).wait()
                pltpu.make_async_copy(ent_hbm.at[0], tail_buf.at[0], sem.at[1]).wait()
                pltpu.make_async_copy(rel_hbm.at[0], rel_buf.at[0], sem.at[2]).wait()

            rel = rel_buf[...]                      # (tb, 2*dim)
            score = _score(head_buf[...], tail_buf[...],
                           rel[:, :dim], rel[:, dim:])   # free 128-lane split
            out_ref[...] = score[None, :]           # lane-dense (1, tb) row

        scratch = [
            pltpu.VMEM((tb, dim), jnp.float32),       # head rows
            pltpu.VMEM((tb, dim), jnp.float32),       # tail rows
            pltpu.VMEM((tb, 2 * dim), jnp.float32),   # relation rows
            pltpu.SemaphoreType.DMA((3,)),
        ]
    else:
        # D not lane-aligned: gather re_head / re_tail halves separately so the
        # kernel never slices across a (8,128) vreg tile boundary.
        def kernel(h_sm, r_sm, t_sm, ent_hbm, rel_hbm, out_ref,
                   head_buf, tail_buf, rh_buf, rt_buf, sem):
            base = pl.program_id(0) * tb

            @pl.loop(0, tb)
            def _(j):
                row = base + j
                r_idx = r_sm[row]
                pltpu.make_async_copy(ent_hbm.at[h_sm[row]], head_buf.at[j],
                                      sem.at[0]).start()
                pltpu.make_async_copy(ent_hbm.at[t_sm[row]], tail_buf.at[j],
                                      sem.at[1]).start()
                pltpu.make_async_copy(rel_hbm.at[r_idx, pl.ds(0, dim)],
                                      rh_buf.at[j], sem.at[2]).start()
                pltpu.make_async_copy(rel_hbm.at[r_idx, pl.ds(dim, dim)],
                                      rt_buf.at[j], sem.at[3]).start()

            @pl.loop(0, tb)
            def _(j):
                pltpu.make_async_copy(ent_hbm.at[0], head_buf.at[0], sem.at[0]).wait()
                pltpu.make_async_copy(ent_hbm.at[0], tail_buf.at[0], sem.at[1]).wait()
                pltpu.make_async_copy(ent_hbm.at[0], rh_buf.at[0], sem.at[2]).wait()
                pltpu.make_async_copy(ent_hbm.at[0], rt_buf.at[0], sem.at[3]).wait()

            score = _score(head_buf[...], tail_buf[...], rh_buf[...], rt_buf[...])
            out_ref[...] = score[None, :]

        scratch = [
            pltpu.VMEM((tb, dim), jnp.float32),
            pltpu.VMEM((tb, dim), jnp.float32),
            pltpu.VMEM((tb, dim), jnp.float32),
            pltpu.VMEM((tb, dim), jnp.float32),
            pltpu.SemaphoreType.DMA((4,)),
        ]
    return kernel, scratch


# ---------------------------------------------------------------------------
# Wrapper (PairRE.forward, mode='hrt')
# ---------------------------------------------------------------------------
def pairre_forward(entity_emb, relation_emb, h, r, t, *, tb=None, interpret=False):
    """PairRE.forward with mode='hrt'. Returns score of shape (B, 1), float32."""
    n_entity, dim = entity_emb.shape
    assert relation_emb.shape[-1] == 2 * dim
    entity_emb = entity_emb.astype(jnp.float32)
    relation_emb = relation_emb.astype(jnp.float32)

    B = int(h.shape[0])
    if tb is None:
        tb = _pick_tb(B, dim)
    tb = max(128, (int(tb) // 128) * 128)

    grid_n = -(-B // tb)
    if grid_n > 1 and grid_n % 2 == 1:
        grid_n += 1                       # even step count -> balanced v7x TCs
    Bp = grid_n * tb

    def prep(idx):
        idx = idx.astype(jnp.int32).reshape(-1)
        return jnp.pad(idx, (0, Bp - B)) if Bp != B else idx

    h_i, r_i, t_i = prep(h), prep(r), prep(t)   # padded rows gather row 0 (valid)

    rel_contiguous = (dim % 128 == 0)
    kernel, scratch = _make_fused_kernel(tb, dim, rel_contiguous)

    # VMEM: gather buffers + headroom for the f32 intermediates kept live by the
    # two norm reductions; capped against the chip's per-core VMEM capacity.
    dp = ((dim + 127) // 128) * 128
    need = 16 * tb * dp                     # 4 x (tb, dp) f32 gathered tiles
    vmem_cap = _vmem_capacity_bytes()
    vmem_limit = int(min(max(2 * need + (8 << 20), 32 << 20), (vmem_cap * 3) // 4))

    out2d = pl.pallas_call(
        kernel,
        out_shape=jax.ShapeDtypeStruct((grid_n, tb), jnp.float32),
        grid_spec=pltpu.PrefetchScalarGridSpec(
            num_scalar_prefetch=3,              # h, r, t -> SMEM
            grid=(grid_n,),
            in_specs=[
                pl.BlockSpec(memory_space=pl.ANY),   # entity table stays in HBM
                pl.BlockSpec(memory_space=pl.ANY),   # relation table stays in HBM
            ],
            out_specs=pl.BlockSpec((1, tb), lambda i, *_: (i, 0)),
            scratch_shapes=scratch,
        ),
        compiler_params=pltpu.CompilerParams(
            dimension_semantics=("parallel",),
            vmem_limit_bytes=vmem_limit,
        ),
        interpret=interpret,
    )(h_i, r_i, t_i, entity_emb, relation_emb)

    return out2d.reshape(-1)[:B].reshape(B, 1)


# ---------------------------------------------------------------------------
# Reference + demo
# ---------------------------------------------------------------------------
def _xavier_uniform(key, shape):
    # nn.init.xavier_uniform_ for a 2-D weight: bound = sqrt(6 / (fan_in + fan_out))
    fan_out, fan_in = shape
    bound = (6.0 / (fan_in + fan_out)) ** 0.5
    return jax.random.uniform(key, shape, jnp.float32, -bound, bound)


def _reference_forward(entity_emb, relation_emb, h, r, t):
    head = jnp.take(entity_emb, h, axis=0).astype(jnp.float32)
    tail = jnp.take(entity_emb, t, axis=0).astype(jnp.float32)
    relation = jnp.take(relation_emb, r, axis=0).astype(jnp.float32)
    re_head, re_tail = jnp.split(relation, 2, axis=-1)
    eps = 1e-12
    head = head / jnp.maximum(jnp.linalg.norm(head, axis=-1, keepdims=True), eps)
    tail = tail / jnp.maximum(jnp.linalg.norm(tail, axis=-1, keepdims=True), eps)
    score = head * re_head - tail * re_tail
    return -jnp.sum(jnp.abs(score), axis=-1, keepdims=True)    # (B, 1)


def _run_case(n_entity, n_relation, dim, batch, key):
    k_e, k_r, k_h, k_rel, k_t = jax.random.split(key, 5)
    entity_emb = _xavier_uniform(k_e, (n_entity, dim))
    relation_emb = _xavier_uniform(k_r, (n_relation, dim * 2))
    h = jax.random.randint(k_h, (batch,), 0, n_entity, dtype=jnp.int32)
    r = jax.random.randint(k_rel, (batch,), 0, n_relation, dtype=jnp.int32)
    t = jax.random.randint(k_t, (batch,), 0, n_entity, dtype=jnp.int32)

    score = jax.block_until_ready(pairre_forward(entity_emb, relation_emb, h, r, t))
    ref = _reference_forward(entity_emb, relation_emb, h, r, t)

    assert score.shape == (batch, 1), score.shape
    assert jnp.allclose(score, ref, atol=1e-4, rtol=1e-4), (score, ref)


if __name__ == "__main__":
    key = jax.random.PRNGKey(0)
    k1, k2 = jax.random.split(key)
    # lane-aligned dim -> single contiguous relation-row gather + free split
    _run_case(n_entity=64, n_relation=16, dim=128, batch=8, key=k1)
    # non-aligned dim -> separate re_head / re_tail row gathers
    _run_case(n_entity=64, n_relation=16, dim=32, batch=8, key=k2)
    print("KERNEL_OK")
</pallas_src>

<mosaic_0001>
module attributes {stable_mosaic.version = 11 : i64} {
  func.func @kernel(%arg0: i32, %arg1: memref<128xi32, #tpu.memory_space<smem>>, %arg2: memref<128xi32, #tpu.memory_space<smem>>, %arg3: memref<128xi32, #tpu.memory_space<smem>>, %arg4: memref<64x128xf32, #tpu.memory_space<any>>, %arg5: memref<16x256xf32, #tpu.memory_space<any>>, %arg6: memref<1x128xf32, #tpu.memory_space<vmem>>, %arg7: memref<128x128xf32, #tpu.memory_space<vmem>>, %arg8: memref<128x128xf32, #tpu.memory_space<vmem>>, %arg9: memref<128x256xf32, #tpu.memory_space<vmem>>, %arg10: memref<3x!tpu.dma_semaphore, #tpu.memory_space<semaphore_mem>>) attributes {dimension_semantics = [#tpu.dimension_semantics<parallel>], iteration_bounds = array<i64: 1>, scalar_prefetch = 3 : i64, scratch_operands = 4 : i64, tpu.core_type = #tpu.core_type<tc>, window_params = [{}, {}, {transform_indices = @transform_2, window_bounds = array<i64: 1, 128>}]} {
    %c128_i32 = arith.constant 128 : i32
    %0 = arith.muli %arg0, %c128_i32 : i32
    %c0_i32 = arith.constant 0 : i32
    %c128_i32_0 = arith.constant 128 : i32
    %1 = arith.addi %c0_i32, %c128_i32_0 : i32
    %c1_i32 = arith.constant 1 : i32
    scf.for %arg11 = %c0_i32 to %1 step %c1_i32  : i32 {
      %c1_i32_17 = arith.constant 1 : i32
      %33 = arith.muli %arg11, %c1_i32_17 : i32
      %c0_i32_18 = arith.constant 0 : i32
      %34 = arith.addi %c0_i32_18, %33 : i32
      %35 = arith.addi %0, %34 : i32
      %36 = arith.index_cast %35 : i32 to index
      %37 = memref.load %arg1[%36] : memref<128xi32, #tpu.memory_space<smem>>
      %c0_i32_19 = arith.constant 0 : i32
      %c0_i32_20 = arith.constant 0 : i32
      %38 = tpu.memref_slice %arg4[%37, %c0_i32_20] : memref<64x128xf32, #tpu.memory_space<any>> -> memref<1x128xf32, #tpu.memory_space<any>>
      %39 = tpu.memref_squeeze %38 : memref<1x128xf32, #tpu.memory_space<any>> -> memref<128xf32, #tpu.memory_space<any>>
      %c0_i32_21 = arith.constant 0 : i32
      %40 = tpu.memref_slice %arg7[%34, %c0_i32_21] : memref<128x128xf32, #tpu.memory_space<vmem>> -> memref<1x128xf32, #tpu.memory_space<vmem>>
      %41 = tpu.memref_squeeze %40 : memref<1x128xf32, #tpu.memory_space<vmem>> -> memref<128xf32, #tpu.memory_space<vmem>>
      %42 = tpu.memref_slice %arg10[%c0_i32_19] : memref<3x!tpu.dma_semaphore, #tpu.memory_space<semaphore_mem>> -> memref<1x!tpu.dma_semaphore, #tpu.memory_space<semaphore_mem>>
      %43 = tpu.memref_squeeze %42 : memref<1x!tpu.dma_semaphore, #tpu.memory_space<semaphore_mem>> -> memref<!tpu.dma_semaphore, #tpu.memory_space<semaphore_mem>>
      tpu.enqueue_dma source(%39 : memref<128xf32, #tpu.memory_space<any>>) target(%41 : memref<128xf32, #tpu.memory_space<vmem>>) target_semaphore(%43 : memref<!tpu.dma_semaphore, #tpu.memory_space<semaphore_mem>>)
      %44 = arith.index_cast %35 : i32 to index
      %45 = memref.load %arg3[%44] : memref<128xi32, #tpu.memory_space<smem>>
      %c1_i32_22 = arith.constant 1 : i32
      %c0_i32_23 = arith.constant 0 : i32
      %46 = tpu.memref_slice %arg4[%45, %c0_i32_23] : memref<64x128xf32, #tpu.memory_space<any>> -> memref<1x128xf32, #tpu.memory_space<any>>
      %47 = tpu.memref_squeeze %46 : memref<1x128xf32, #tpu.memory_space<any>> -> memref<128xf32, #tpu.memory_space<any>>
      %c0_i32_24 = arith.constant 0 : i32
      %48 = tpu.memref_slice %arg8[%34, %c0_i32_24] : memref<128x128xf32, #tpu.memory_space<vmem>> -> memref<1x128xf32, #tpu.memory_space<vmem>>
      %49 = tpu.memref_squeeze %48 : memref<1x128xf32, #tpu.memory_space<vmem>> -> memref<128xf32, #tpu.memory_space<vmem>>
      %50 = tpu.memref_slice %arg10[%c1_i32_22] : memref<3x!tpu.dma_semaphore, #tpu.memory_space<semaphore_mem>> -> memref<1x!tpu.dma_semaphore, #tpu.memory_space<semaphore_mem>>
      %51 = tpu.memref_squeeze %50 : memref<1x!tpu.dma_semaphore, #tpu.memory_space<semaphore_mem>> -> memref<!tpu.dma_semaphore, #tpu.memory_space<semaphore_mem>>
      tpu.enqueue_dma source(%47 : memref<128xf32, #tpu.memory_space<any>>) target(%49 : memref<128xf32, #tpu.memory_space<vmem>>) target_semaphore(%51 : memref<!tpu.dma_semaphore, #tpu.memory_space<semaphore_mem>>)
      %52 = arith.index_cast %35 : i32 to index
      %53 = memref.load %arg2[%52] : memref<128xi32, #tpu.memory_space<smem>>
      %c2_i32 = arith.constant 2 : i32
      %c0_i32_25 = arith.constant 0 : i32
      %54 = tpu.memref_slice %arg5[%53, %c0_i32_25] : memref<16x256xf32, #tpu.memory_space<any>> -> memref<1x256xf32, #tpu.memory_space<any>>
      %55 = tpu.memref_squeeze %54 : memref<1x256xf32, #tpu.memory_space<any>> -> memref<256xf32, #tpu.memory_space<any>>
      %c0_i32_26 = arith.constant 0 : i32
      %56 = tpu.memref_slice %arg9[%34, %c0_i32_26] : memref<128x256xf32, #tpu.memory_space<vmem>> -> memref<1x256xf32, #tpu.memory_space<vmem>>
      %57 = tpu.memref_squeeze %56 : memref<1x256xf32, #tpu.memory_space<vmem>> -> memref<256xf32, #tpu.memory_space<vmem>>
      %58 = tpu.memref_slice %arg10[%c2_i32] : memref<3x!tpu.dma_semaphore, #tpu.memory_space<semaphore_mem>> -> memref<1x!tpu.dma_semaphore, #tpu.memory_space<semaphore_mem>>
      %59 = tpu.memref_squeeze %58 : memref<1x!tpu.dma_semaphore, #tpu.memory_space<semaphore_mem>> -> memref<!tpu.dma_semaphore, #tpu.memory_space<semaphore_mem>>
      tpu.enqueue_dma source(%55 : memref<256xf32, #tpu.memory_space<any>>) target(%57 : memref<256xf32, #tpu.memory_space<vmem>>) target_semaphore(%59 : memref<!tpu.dma_semaphore, #tpu.memory_space<semaphore_mem>>)
    }
    %c128_i32_1 = arith.constant 128 : i32
    %c0_i32_2 = arith.constant 0 : i32
    %c128_i32_3 = arith.constant 128 : i32
    %2 = arith.addi %c0_i32_2, %c128_i32_3 : i32
    %c1_i32_4 = arith.constant 1 : i32
    scf.for %arg11 = %c0_i32_2 to %2 step %c1_i32_4  : i32 {
      %c0_i32_17 = arith.constant 0 : i32
      %c0_i32_18 = arith.constant 0 : i32
      %c0_i32_19 = arith.constant 0 : i32
      %c0_i32_20 = arith.constant 0 : i32
      %33 = tpu.memref_slice %arg4[%c0_i32_17, %c0_i32_20] : memref<64x128xf32, #tpu.memory_space<any>> -> memref<1x128xf32, #tpu.memory_space<any>>
      %34 = tpu.memref_squeeze %33 : memref<1x128xf32, #tpu.memory_space<any>> -> memref<128xf32, #tpu.memory_space<any>>
      %c0_i32_21 = arith.constant 0 : i32
      %35 = tpu.memref_slice %arg7[%c0_i32_18, %c0_i32_21] : memref<128x128xf32, #tpu.memory_space<vmem>> -> memref<1x128xf32, #tpu.memory_space<vmem>>
      %36 = tpu.memref_squeeze %35 : memref<1x128xf32, #tpu.memory_space<vmem>> -> memref<128xf32, #tpu.memory_space<vmem>>
      %37 = tpu.memref_slice %arg10[%c0_i32_19] : memref<3x!tpu.dma_semaphore, #tpu.memory_space<semaphore_mem>> -> memref<1x!tpu.dma_semaphore, #tpu.memory_space<semaphore_mem>>
      %38 = tpu.memref_squeeze %37 : memref<1x!tpu.dma_semaphore, #tpu.memory_space<semaphore_mem>> -> memref<!tpu.dma_semaphore, #tpu.memory_space<semaphore_mem>>
      tpu.wait_dma2 semaphore(%38 : memref<!tpu.dma_semaphore, #tpu.memory_space<semaphore_mem>>) src(%34 : memref<128xf32, #tpu.memory_space<any>>) dst(%36 : memref<128xf32, #tpu.memory_space<vmem>>)
      %c0_i32_22 = arith.constant 0 : i32
      %c0_i32_23 = arith.constant 0 : i32
      %c1_i32_24 = arith.constant 1 : i32
      %c0_i32_25 = arith.constant 0 : i32
      %39 = tpu.memref_slice %arg4[%c0_i32_22, %c0_i32_25] : memref<64x128xf32, #tpu.memory_space<any>> -> memref<1x128xf32, #tpu.memory_space<any>>
      %40 = tpu.memref_squeeze %39 : memref<1x128xf32, #tpu.memory_space<any>> -> memref<128xf32, #tpu.memory_space<any>>
      %c0_i32_26 = arith.constant 0 : i32
      %41 = tpu.memref_slice %arg8[%c0_i32_23, %c0_i32_26] : memref<128x128xf32, #tpu.memory_space<vmem>> -> memref<1x128xf32, #tpu.memory_space<vmem>>
      %42 = tpu.memref_squeeze %41 : memref<1x128xf32, #tpu.memory_space<vmem>> -> memref<128xf32, #tpu.memory_space<vmem>>
      %43 = tpu.memref_slice %arg10[%c1_i32_24] : memref<3x!tpu.dma_semaphore, #tpu.memory_space<semaphore_mem>> -> memref<1x!tpu.dma_semaphore, #tpu.memory_space<semaphore_mem>>
      %44 = tpu.memref_squeeze %43 : memref<1x!tpu.dma_semaphore, #tpu.memory_space<semaphore_mem>> -> memref<!tpu.dma_semaphore, #tpu.memory_space<semaphore_mem>>
      tpu.wait_dma2 semaphore(%44 : memref<!tpu.dma_semaphore, #tpu.memory_space<semaphore_mem>>) src(%40 : memref<128xf32, #tpu.memory_space<any>>) dst(%42 : memref<128xf32, #tpu.memory_space<vmem>>)
      %c0_i32_27 = arith.constant 0 : i32
      %c0_i32_28 = arith.constant 0 : i32
      %c2_i32 = arith.constant 2 : i32
      %c0_i32_29 = arith.constant 0 : i32
      %45 = tpu.memref_slice %arg5[%c0_i32_27, %c0_i32_29] : memref<16x256xf32, #tpu.memory_space<any>> -> memref<1x256xf32, #tpu.memory_space<any>>
      %46 = tpu.memref_squeeze %45 : memref<1x256xf32, #tpu.memory_space<any>> -> memref<256xf32, #tpu.memory_space<any>>
      %c0_i32_30 = arith.constant 0 : i32
      %47 = tpu.memref_slice %arg9[%c0_i32_28, %c0_i32_30] : memref<128x256xf32, #tpu.memory_space<vmem>> -> memref<1x256xf32, #tpu.memory_space<vmem>>
      %48 = tpu.memref_squeeze %47 : memref<1x256xf32, #tpu.memory_space<vmem>> -> memref<256xf32, #tpu.memory_space<vmem>>
      %49 = tpu.memref_slice %arg10[%c2_i32] : memref<3x!tpu.dma_semaphore, #tpu.memory_space<semaphore_mem>> -> memref<1x!tpu.dma_semaphore, #tpu.memory_space<semaphore_mem>>
      %50 = tpu.memref_squeeze %49 : memref<1x!tpu.dma_semaphore, #tpu.memory_space<semaphore_mem>> -> memref<!tpu.dma_semaphore, #tpu.memory_space<semaphore_mem>>
      tpu.wait_dma2 semaphore(%50 : memref<!tpu.dma_semaphore, #tpu.memory_space<semaphore_mem>>) src(%46 : memref<256xf32, #tpu.memory_space<any>>) dst(%48 : memref<256xf32, #tpu.memory_space<vmem>>)
    }
    %c0 = arith.constant 0 : index
    %c0_5 = arith.constant 0 : index
    %3 = vector.load %arg9[%c0, %c0_5] : memref<128x256xf32, #tpu.memory_space<vmem>>, vector<128x256xf32>
    %c0_6 = arith.constant 0 : index
    %c0_7 = arith.constant 0 : index
    %4 = vector.load %arg7[%c0_6, %c0_7] : memref<128x128xf32, #tpu.memory_space<vmem>>, vector<128x128xf32>
    %c0_8 = arith.constant 0 : index
    %c0_9 = arith.constant 0 : index
    %5 = vector.load %arg8[%c0_8, %c0_9] : memref<128x128xf32, #tpu.memory_space<vmem>>, vector<128x128xf32>
    %6 = vector.extract_strided_slice %3 {offsets = [0, 0], sizes = [128, 128], strides = [1, 1]} : vector<128x256xf32> to vector<128x128xf32>
    %7 = vector.extract_strided_slice %3 {offsets = [0, 128], sizes = [128, 128], strides = [1, 1]} : vector<128x256xf32> to vector<128x128xf32>
    %8 = arith.mulf %4, %4 : vector<128x128xf32>
    %cst = arith.constant dense<0.000000e+00> : vector<128xf32>
    %9 = vector.multi_reduction <add>, %8, %cst [1] : vector<128x128xf32> to vector<128xf32>
    %10 = vector.shape_cast %9 : vector<128xf32> to vector<128x1xf32>
    %11 = math.rsqrt %10 : vector<128x1xf32>
    %cst_10 = arith.constant 9.99999995E+11 : f32
    %12 = vector.broadcast %cst_10 : f32 to vector<128x1xf32>
    %13 = arith.minimumf %11, %12 : vector<128x1xf32>
    %14 = vector.broadcast %13 : vector<128x1xf32> to vector<128x128xf32>
    %15 = arith.mulf %4, %14 : vector<128x128xf32>
    %16 = arith.mulf %15, %6 : vector<128x128xf32>
    %17 = arith.mulf %5, %5 : vector<128x128xf32>
    %cst_11 = arith.constant dense<0.000000e+00> : vector<128xf32>
    %18 = vector.multi_reduction <add>, %17, %cst_11 [1] : vector<128x128xf32> to vector<128xf32>
    %19 = vector.shape_cast %18 : vector<128xf32> to vector<128x1xf32>
    %20 = math.rsqrt %19 : vector<128x1xf32>
    %cst_12 = arith.constant 9.99999995E+11 : f32
    %21 = vector.broadcast %cst_12 : f32 to vector<128x1xf32>
    %22 = arith.minimumf %20, %21 : vector<128x1xf32>
    %23 = vector.broadcast %22 : vector<128x1xf32> to vector<128x128xf32>
    %24 = arith.mulf %5, %23 : vector<128x128xf32>
    %25 = arith.mulf %24, %7 : vector<128x128xf32>
    %26 = arith.subf %16, %25 : vector<128x128xf32>
    %27 = math.absf %26 : vector<128x128xf32>
    %cst_13 = arith.constant dense<0.000000e+00> : vector<128xf32>
    %28 = vector.multi_reduction <add>, %27, %cst_13 [1] : vector<128x128xf32> to vector<128xf32>
    %cst_14 = arith.constant 0.000000e+00 : f32
    %29 = vector.broadcast %cst_14 : f32 to vector<128xf32>
    %30 = arith.subf %29, %28 : vector<128xf32>
    %31 = vector.shape_cast %30 : vector<128xf32> to vector<1x128xf32>
    %c0_15 = arith.constant 0 : index
    %c0_16 = arith.constant 0 : index
    %32 = vector.load %arg6[%c0_15, %c0_16] : memref<1x128xf32, #tpu.memory_space<vmem>>, vector<1x128xf32>
    tpu.vector_store %arg6[%c0_15, %c0_16], %31 {strides = array<i32>} : memref<1x128xf32, #tpu.memory_space<vmem>>, vector<1x128xf32>,
    return
  }
  func.func @transform_2(%arg0: i32, %arg1: memref<128xi32, #tpu.memory_space<smem>>, %arg2: memref<128xi32, #tpu.memory_space<smem>>, %arg3: memref<128xi32, #tpu.memory_space<smem>>) -> (i32, i32) {
    %c0_i32 = arith.constant 0 : i32
    %c0_i32_0 = arith.constant 0 : i32
    return %arg0, %c0_i32 : i32, i32
  }
}

</mosaic_0001>

<llo_original>
// kernel: tpu_custom_call.1
$region0: #{tpu_custom_call.1}
  #allocation0 [shape = 'u32[]', space=smem, size = 0x4, offset = 0x4, fixed_abs, tag = 'smem constant byte address 0x4 - core index']
  #allocation1 [shape = 'u32[144,128]{1,0:T(1,128)}', space=vmem, size = 0x12000, scoped, tag = 'internal scratch']
  #allocation2 [shape = 'f32[128,128]{1,0:T(8,128)}', space=vmem, size = 0x10000, scoped, tag = 'scratch operand']
  #allocation3 [shape = 'f32[128,128]{1,0:T(8,128)}', space=vmem, size = 0x10000, scoped, tag = 'scratch operand']
  #allocation4 [shape = 'f32[128,256]{1,0:T(8,128)}', space=vmem, size = 0x20000, scoped, tag = 'scratch operand']
  #allocation5 [shape = 's32[3]{0}', space=sflag, size = 0xc, scoped, tag = 'scratch operand']
  #allocation6 [shape = 's32[1]{0}', space=sflag, size = 0x4, scoped, tag = 'scoped memory for tpu_custom_call.1']
  #allocation7 [shape = 'u8[512]{0}', space=smem, size = 0x200, scoped, tag = 'prefetched SMEM operand 0']
  #allocation8 [shape = 'u8[512]{0}', space=smem, size = 0x200, scoped, tag = 'prefetched SMEM operand 1']
  #allocation9 [shape = 'u8[512]{0}', space=smem, size = 0x200, scoped, tag = 'prefetched SMEM operand 2']
  #allocation12 [shape = 's32[]', space=sflag, size = 0x4, offset = 0, fixed_abs, tag = 'sflag constant byte address 0x0 - dummy sync flag']
  #allocation13 [shape = 's32[]', space=sflag, size = 0x4, offset = 0, fixed_abs, tag = 'sflag constant byte address 0x0 - dummy sync flag']
  #allocation14 [shape = 'u32[]', space=smem, size = 0x4, offset = 0x44, fixed_abs, tag = 'smem constant byte address 0x44 - assertion arg 0']
  #allocation15 [shape = 'u32[]', space=smem, size = 0x4, offset = 0x48, fixed_abs, tag = 'smem constant byte address 0x48 - assertion arg 1']
  #allocation16 [shape = 's32[]', space=sflag, size = 0x4, offset = 0, fixed_abs, tag = 'sflag constant byte address 0x0 - dummy sync flag']
  #allocation17 [shape = 's32[]', space=sflag, size = 0x4, offset = 0, fixed_abs, tag = 'sflag constant byte address 0x0 - dummy sync flag']
  #allocation18 [shape = 's32[]', space=sflag, size = 0x4, offset = 0, fixed_abs, tag = 'sflag constant byte address 0x0 - dummy sync flag']
  %s0 = inlined_call_operand.hbm [shape: s32[128], index: 0, kind: input, shape index: {}]
  %s1 = inlined_call_operand.vmem [shape: s32[128], index: 1, kind: input, shape index: {}]
  %s2 = inlined_call_operand.vmem [shape: s32[128], index: 2, kind: input, shape index: {}]
  %s3 = inlined_call_operand.hbm [shape: f32[64,128], index: 3, kind: input, shape index: {}]
  %s4 = inlined_call_operand.hbm [shape: f32[16,256], index: 4, kind: input, shape index: {}]
  %s5 = inlined_call_operand.hbm [shape: f32[1,128], index: 5, kind: output, shape index: {}]
  %s6 = sld [smem:[#allocation0]]
  $region32: #{tpu_custom_call.1} parent=0
    _
  %s8 = ssub.s32 1, %s6
  %s9 = scalar_select 0, %s8, %s6
  %11 = dma.hbm_to_smem %s0, 16, [#allocation7], [#allocation6]
  %s12 = sshll.u32 %s1, 4
  %s13 = int_to_ptr.vmem [resolvable:$true] %s12
  %15 = dma.vmem_to_smem %s13, 16, [#allocation8], [#allocation6]
  %s16 = sshll.u32 %s2, 4
  %s17 = int_to_ptr.vmem [resolvable:$true] %s16
  %19 = dma.vmem_to_smem %s17, 16, [#allocation9], [#allocation6]
  %20 = dma.done [#allocation6], 48
  %21 = sfence
  $region1: #{tpu_custom_call.1} parent=0
    #allocation10 [shape = 'u8[512]{0}', space=vmem, size = 0x400, scoped, tag = 'output window, operand 0, single buffered']
    #allocation11 [shape = 's32[1]{0}', space=sflag, size = 0x4, scoped, tag = 'scoped memory for tpu_custom_call.1']
    %22 = vsyncpa [#allocation11], 0
    %s23 = smul.u32 0, 128
    loop: start=0, step=1, limit=128
    $region2: #{tpu_custom_call.1} parent=1 // loop_pre_header
      _
    $region3: #{tpu_custom_call.1} parent=1 // loop_header
      %s25 = sphi 0, %s29
      %p26 = scmp.ge.s32.totalorder %s25, 128
    $region4: #{tpu_custom_call.1} parent=1 // loop_header_branch
      %28 = sbr.rel (%p26) target = $region8
    $region5: #{tpu_custom_call.1} parent=1 // loop_body
      %s30 = sadd.s32 %s23, %s25
      %s31 = sld [smem:[#allocation7 + %s30]]
      %s32 = smul.addr %s31, 16
      %s33 = scalar_lea.hbm %s3, %s32
      %s34 = scalar_lea.vmem [#allocation2], %s25
      // Predicated region
      $region9: #{tpu_custom_call.1} parent=5 // pred_check
        _
      $region10: #{tpu_custom_call.1} parent=5 // pred_check_branch
        %36 = sbr.rel target = $region12
      $region11: #{tpu_custom_call.1} parent=5 // pred_region
        %37 = sst [smem:[#allocation14]] [#allocation13]
        %38 = sst [smem:[#allocation15]] [#allocation12]
      $region12: #{tpu_custom_call.1} parent=5 // pred_fallthru
        _
      %40 = shalt.err (0)
      %s42 = sshll.u32 %s34, 4
      %s43 = int_to_ptr.vmem [resolvable:$true] %s42
      %45 = dma.hbm_to_vmem [thread:$0]  %s33, 16, %s43, [#allocation5]
      %s46 = sld [smem:[#allocation9 + %s30]]
      %s47 = smul.addr %s46, 16
      %s48 = scalar_lea.hbm %s3, %s47
      %s49 = scalar_lea.vmem [#allocation3], %s25
      %s50 = scalar_lea.sflag [#allocation5], 1
      // Predicated region
      $region13: #{tpu_custom_call.1} parent=5 // pred_check
        _
      $region14: #{tpu_custom_call.1} parent=5 // pred_check_branch
        %52 = sbr.rel target = $region16
      $region15: #{tpu_custom_call.1} parent=5 // pred_region
        %53 = sst [smem:[#allocation14]] [#allocation17]
        %54 = sst [smem:[#allocation15]] [#allocation16]
      $region16: #{tpu_custom_call.1} parent=5 // pred_fallthru
        _
      %56 = shalt.err (0)
      %s58 = sshll.u32 %s49, 4
      %s59 = int_to_ptr.vmem [resolvable:$true] %s58
      %61 = dma.hbm_to_vmem [thread:$0]  %s48, 16, %s59, %s50
      %s62 = sld [smem:[#allocation8 + %s30]]
      %s63 = sshrl.u32 %s62, 3
      %s64 = sand.u32 %s62, 7
      %s65 = smul.u32 %s63, 16
      %s66 = sadd.s32 %s64, %s65
      %s67 = smul.addr %s66, 16
      %s68 = scalar_lea.hbm %s4, %s67
      %s69 = sshrl.u32 %s25, 3
      %s70 = sand.u32 %s25, 7
      %s71 = smul.u32 %s69, 16
      %s72 = sadd.s32 %s70, %s71
      %s73 = scalar_lea.vmem [#allocation4], %s72
      %s74 = scalar_lea.sflag [#allocation5], 2
      %s76 = sshll.u32 %s73, 4
      %s77 = int_to_ptr.vmem [resolvable:$true] %s76
      %79 = dma.hbm_to_vmem [thread:$0]  %s68, 32, %s77, %s74, 128, 128, 1
    $region6: #{tpu_custom_call.1} parent=1 // loop_footer
      %s29 = sadd.s32 1, %s25
    $region7: #{tpu_custom_call.1} parent=1 // loop_footer_branch
      %24 = sbr.rel target = $region3
    $region8: #{tpu_custom_call.1} parent=1 // loop_exit
      _
    loop: start=0, step=1, limit=128
    $region17: #{tpu_custom_call.1} parent=1 // loop_pre_header
      _
    $region18: #{tpu_custom_call.1} parent=1 // loop_header
      %s81 = sphi 0, %s85
      %p82 = scmp.ge.s32.totalorder %s81, 128
    $region19: #{tpu_custom_call.1} parent=1 // loop_header_branch
      %84 = sbr.rel (%p82) target = $region23
    $region20: #{tpu_custom_call.1} parent=1 // loop_body
      %87 = dma.done [#allocation5], 16
      %s88 = scalar_lea.sflag [#allocation5], 1
      %90 = dma.done %s88, 16
      %s91 = scalar_lea.sflag [#allocation5], 2
      %93 = dma.done %s91, 32
    $region21: #{tpu_custom_call.1} parent=1 // loop_footer
      %s85 = sadd.s32 1, %s81
    $region22: #{tpu_custom_call.1} parent=1 // loop_footer_branch
      %80 = sbr.rel target = $region18
    $region23: #{tpu_custom_call.1} parent=1 // loop_exit
      _
    %v94 = vld [vmem:[#allocation4] sm:$0xff]
    %v95 = vld [vmem:[#allocation4 + $0x8] sm:$0xff]
    %v96 = vld [vmem:[#allocation4 + $0x10] sm:$0xff]
    %v97 = vld [vmem:[#allocation4 + $0x18] sm:$0xff]
    %v98 = vld [vmem:[#allocation4 + $0x20] sm:$0xff]
    %v99 = vld [vmem:[#allocation4 + $0x28] sm:$0xff]
    %v100 = vld [vmem:[#allocation4 + $0x30] sm:$0xff]
    %v101 = vld [vmem:[#allocation4 + $0x38] sm:$0xff]
    %v102 = vld [vmem:[#allocation4 + $0x40] sm:$0xff]
    %v103 = vld [vmem:[#allocation4 + $0x48] sm:$0xff]
    %v104 = vld [vmem:[#allocation4 + $0x50] sm:$0xff]
    %v105 = vld [vmem:[#allocation4 + $0x58] sm:$0xff]
    %v106 = vld [vmem:[#allocation4 + $0x60] sm:$0xff]
    %v107 = vld [vmem:[#allocation4 + $0x68] sm:$0xff]
    %v108 = vld [vmem:[#allocation4 + $0x70] sm:$0xff]
    %v109 = vld [vmem:[#allocation4 + $0x78] sm:$0xff]
    %v110 = vld [vmem:[#allocation4 + $0x80] sm:$0xff]
    %v111 = vld [vmem:[#allocation4 + $0x88] sm:$0xff]
    %v112 = vld [vmem:[#allocation4 + $0x90] sm:$0xff]
    %v113 = vld [vmem:[#allocation4 + $0x98] sm:$0xff]
    %v114 = vld [vmem:[#allocation4 + $0xa0] sm:$0xff]
    %v115 = vld [vmem:[#allocation4 + $0xa8] sm:$0xff]
    %v116 = vld [vmem:[#allocation4 + $0xb0] sm:$0xff]
    %v117 = vld [vmem:[#allocation4 + $0xb8] sm:$0xff]
    %v118 = vld [vmem:[#allocation4 + $0xc0] sm:$0xff]
    %v119 = vld [vmem:[#allocation4 + $0xc8] sm:$0xff]
    %v120 = vld [vmem:[#allocation4 + $0xd0] sm:$0xff]
    %v121 = vld [vmem:[#allocation4 + $0xd8] sm:$0xff]
    %v122 = vld [vmem:[#allocation4 + $0xe0] sm:$0xff]
    %v123 = vld [vmem:[#allocation4 + $0xe8] sm:$0xff]
    %v124 = vld [vmem:[#allocation4 + $0xf0] sm:$0xff]
    %v125 = vld [vmem:[#allocation4 + $0xf8] sm:$0xff]
    %v126 = vld [vmem:[#allocation2] sm:$0xff]
    %v127 = vld [vmem:[#allocation2 + $0x8] sm:$0xff]
    %v128 = vld [vmem:[#allocation2 + $0x10] sm:$0xff]
    %v129 = vld [vmem:[#allocation2 + $0x18] sm:$0xff]
    %v130 = vld [vmem:[#allocation2 + $0x20] sm:$0xff]
    %v131 = vld [vmem:[#allocation2 + $0x28] sm:$0xff]
    %v132 = vld [vmem:[#allocation2 + $0x30] sm:$0xff]
    %v133 = vld [vmem:[#allocation2 + $0x38] sm:$0xff]
    %v134 = vld [vmem:[#allocation2 + $0x40] sm:$0xff]
    %v135 = vld [vmem:[#allocation2 + $0x48] sm:$0xff]
    %v136 = vld [vmem:[#allocation2 + $0x50] sm:$0xff]
    %v137 = vld [vmem:[#allocation2 + $0x58] sm:$0xff]
    %v138 = vld [vmem:[#allocation2 + $0x60] sm:$0xff]
    %v139 = vld [vmem:[#allocation2 + $0x68] sm:$0xff]
    %v140 = vld [vmem:[#allocation2 + $0x70] sm:$0xff]
    %v141 = vld [vmem:[#allocation2 + $0x78] sm:$0xff]
    %v142 = vld [vmem:[#allocation3] sm:$0xff]
    %v143 = vld [vmem:[#allocation3 + $0x8] sm:$0xff]
    %v144 = vld [vmem:[#allocation3 + $0x10] sm:$0xff]
    %v145 = vld [vmem:[#allocation3 + $0x18] sm:$0xff]
    %v146 = vld [vmem:[#allocation3 + $0x20] sm:$0xff]
    %v147 = vld [vmem:[#allocation3 + $0x28] sm:$0xff]
    %v148 = vld [vmem:[#allocation3 + $0x30] sm:$0xff]
    %v149 = vld [vmem:[#allocation3 + $0x38] sm:$0xff]
    %v150 = vld [vmem:[#allocation3 + $0x40] sm:$0xff]
    %v151 = vld [vmem:[#allocation3 + $0x48] sm:$0xff]
    %v152 = vld [vmem:[#allocation3 + $0x50] sm:$0xff]
    %v153 = vld [vmem:[#allocation3 + $0x58] sm:$0xff]
    %v154 = vld [vmem:[#allocation3 + $0x60] sm:$0xff]
    %v155 = vld [vmem:[#allocation3 + $0x68] sm:$0xff]
    %v156 = vld [vmem:[#allocation3 + $0x70] sm:$0xff]
    %v157 = vld [vmem:[#allocation3 + $0x78] sm:$0xff]
    %v158 = vmul.f32 %v126, %v126
    %v159 = vmul.f32 %v127, %v127
    %v160 = vmul.f32 %v128, %v128
    %v161 = vmul.f32 %v129, %v129
    %v162 = vmul.f32 %v130, %v130
    %v163 = vmul.f32 %v131, %v131
    %v164 = vmul.f32 %v132, %v132
    %v165 = vmul.f32 %v133, %v133
    %v166 = vmul.f32 %v134, %v134
    %v167 = vmul.f32 %v135, %v135
    %v168 = vmul.f32 %v136, %v136
    %v169 = vmul.f32 %v137, %v137
    %v170 = vmul.f32 %v138, %v138
    %v171 = vmul.f32 %v139, %v139
    %v172 = vmul.f32 %v140, %v140
    %v173 = vmul.f32 %v141, %v141
    %174 = vadd.xlane.f32.xlu0 %v158
    %v175 = vpop.xlane.xlu0 %174
    %176 = vadd.xlane.f32.xlu0 %v159
    %v177 = vpop.xlane.xlu0 %176
    %178 = vadd.xlane.f32.xlu0 %v160
    %v179 = vpop.xlane.xlu0 %178
    %180 = vadd.xlane.f32.xlu0 %v161
    %v181 = vpop.xlane.xlu0 %180
    %182 = vadd.xlane.f32.xlu0 %v162
    %v183 = vpop.xlane.xlu0 %182
    %184 = vadd.xlane.f32.xlu0 %v163
    %v185 = vpop.xlane.xlu0 %184
    %186 = vadd.xlane.f32.xlu0 %v164
    %v187 = vpop.xlane.xlu0 %186
    %188 = vadd.xlane.f32.xlu0 %v165
    %v189 = vpop.xlane.xlu0 %188
    %190 = vadd.xlane.f32.xlu0 %v166
    %v191 = vpop.xlane.xlu0 %190
    %192 = vadd.xlane.f32.xlu0 %v167
    %v193 = vpop.xlane.xlu0 %192
    %194 = vadd.xlane.f32.xlu0 %v168
    %v195 = vpop.xlane.xlu0 %194
    %196 = vadd.xlane.f32.xlu0 %v169
    %v197 = vpop.xlane.xlu0 %196
    %198 = vadd.xlane.f32.xlu0 %v170
    %v199 = vpop.xlane.xlu0 %198
    %200 = vadd.xlane.f32.xlu0 %v171
    %v201 = vpop.xlane.xlu0 %200
    %202 = vadd.xlane.f32.xlu0 %v172
    %v203 = vpop.xlane.xlu0 %202
    %204 = vadd.xlane.f32.xlu0 %v173
    %v205 = vpop.xlane.xlu0 %204
    %v206 = vrsqrt.pop %v175
    %v207 = vrsqrt.pop %v177
    %v208 = vrsqrt.pop %v179
    %v209 = vrsqrt.pop %v181
    %v210 = vrsqrt.pop %v183
    %v211 = vrsqrt.pop %v185
    %v212 = vrsqrt.pop %v187
    %v213 = vrsqrt.pop %v189
    %v214 = vrsqrt.pop %v191
    %v215 = vrsqrt.pop %v193
    %v216 = vrsqrt.pop %v195
    %v217 = vrsqrt.pop %v197
    %v218 = vrsqrt.pop %v199
    %v219 = vrsqrt.pop %v201
    %v220 = vrsqrt.pop %v203
    %v221 = vrsqrt.pop %v205
    %v222 = vmin.f32 %v206, 1e+12
    %v223 = vmin.f32 %v207, 1e+12
    %v224 = vmin.f32 %v208, 1e+12
    %v225 = vmin.f32 %v209, 1e+12
    %v226 = vmin.f32 %v210, 1e+12
    %v227 = vmin.f32 %v211, 1e+12
    %v228 = vmin.f32 %v212, 1e+12
    %v229 = vmin.f32 %v213, 1e+12
    %v230 = vmin.f32 %v214, 1e+12
    %v231 = vmin.f32 %v215, 1e+12
    %v232 = vmin.f32 %v216, 1e+12
    %v233 = vmin.f32 %v217, 1e+12
    %v234 = vmin.f32 %v218, 1e+12
    %v235 = vmin.f32 %v219, 1e+12
    %v236 = vmin.f32 %v220, 1e+12
    %v237 = vmin.f32 %v221, 1e+12
    %v238 = vmul.f32 %v126, %v222
    %v239 = vmul.f32 %v127, %v223
    %v240 = vmul.f32 %v128, %v224
    %v241 = vmul.f32 %v129, %v225
    %v242 = vmul.f32 %v130, %v226
    %v243 = vmul.f32 %v131, %v227
    %v244 = vmul.f32 %v132, %v228
    %v245 = vmul.f32 %v133, %v229
    %v246 = vmul.f32 %v134, %v230
    %v247 = vmul.f32 %v135, %v231
    %v248 = vmul.f32 %v136, %v232
    %v249 = vmul.f32 %v137, %v233
    %v250 = vmul.f32 %v138, %v234
    %v251 = vmul.f32 %v139, %v235
    %v252 = vmul.f32 %v140, %v236
    %v253 = vmul.f32 %v141, %v237
    %v254 = vmul.f32 %v238, %v94
    %v255 = vmul.f32 %v239, %v96
    %v256 = vmul.f32 %v240, %v98
    %v257 = vmul.f32 %v241, %v100
    %v258 = vmul.f32 %v242, %v102
    %v259 = vmul.f32 %v243, %v104
    %v260 = vmul.f32 %v244, %v106
    %v261 = vmul.f32 %v245, %v108
    %v262 = vmul.f32 %v246, %v110
    %v263 = vmul.f32 %v247, %v112
    %v264 = vmul.f32 %v248, %v114
    %v265 = vmul.f32 %v249, %v116
    %v266 = vmul.f32 %v250, %v118
    %v267 = vmul.f32 %v251, %v120
    %v268 = vmul.f32 %v252, %v122
    %v269 = vmul.f32 %v253, %v124
    %v270 = vmul.f32 %v142, %v142
    %v271 = vmul.f32 %v143, %v143
    %v272 = vmul.f32 %v144, %v144
    %v273 = vmul.f32 %v145, %v145
    %v274 = vmul.f32 %v146, %v146
    %v275 = vmul.f32 %v147, %v147
    %v276 = vmul.f32 %v148, %v148
    %v277 = vmul.f32 %v149, %v149
    %v278 = vmul.f32 %v150, %v150
    %v279 = vmul.f32 %v151, %v151
    %v280 = vmul.f32 %v152, %v152
    %v281 = vmul.f32 %v153, %v153
    %v282 = vmul.f32 %v154, %v154
    %v283 = vmul.f32 %v155, %v155
    %v284 = vmul.f32 %v156, %v156
    %v285 = vmul.f32 %v157, %v157
    %286 = vadd.xlane.f32.xlu0 %v270
    %v287 = vpop.xlane.xlu0 %286
    %288 = vadd.xlane.f32.xlu0 %v271
    %v289 = vpop.xlane.xlu0 %288
    %290 = vadd.xlane.f32.xlu0 %v272
    %v291 = vpop.xlane.xlu0 %290
    %292 = vadd.xlane.f32.xlu0 %v273
    %v293 = vpop.xlane.xlu0 %292
    %294 = vadd.xlane.f32.xlu0 %v274
    %v295 = vpop.xlane.xlu0 %294
    %296 = vadd.xlane.f32.xlu0 %v275
    %v297 = vpop.xlane.xlu0 %296
    %298 = vadd.xlane.f32.xlu0 %v276
    %v299 = vpop.xlane.xlu0 %298
    %300 = vadd.xlane.f32.xlu0 %v277
    %v301 = vpop.xlane.xlu0 %300
    %302 = vadd.xlane.f32.xlu0 %v278
    %v303 = vpop.xlane.xlu0 %302
    %304 = vadd.xlane.f32.xlu0 %v279
    %v305 = vpop.xlane.xlu0 %304
    %306 = vadd.xlane.f32.xlu0 %v280
    %v307 = vpop.xlane.xlu0 %306
    %308 = vadd.xlane.f32.xlu0 %v281
    %v309 = vpop.xlane.xlu0 %308
    %310 = vadd.xlane.f32.xlu0 %v282
    %v311 = vpop.xlane.xlu0 %310
    %312 = vadd.xlane.f32.xlu0 %v283
    %v313 = vpop.xlane.xlu0 %312
    %314 = vadd.xlane.f32.xlu0 %v284
    %v315 = vpop.xlane.xlu0 %314
    %316 = vadd.xlane.f32.xlu0 %v285
    %v317 = vpop.xlane.xlu0 %316
    %v318 = vrsqrt.pop %v287
    %v319 = vrsqrt.pop %v289
    %v320 = vrsqrt.pop %v291
    %v321 = vrsqrt.pop %v293
    %v322 = vrsqrt.pop %v295
    %v323 = vrsqrt.pop %v297
    %v324 = vrsqrt.pop %v299
    %v325 = vrsqrt.pop %v301
    %v326 = vrsqrt.pop %v303
    %v327 = vrsqrt.pop %v305
    %v328 = vrsqrt.pop %v307
    %v329 = vrsqrt.pop %v309
    %v330 = vrsqrt.pop %v311
    %v331 = vrsqrt.pop %v313
    %v332 = vrsqrt.pop %v315
    %v333 = vrsqrt.pop %v317
    %v334 = vmin.f32 %v318, 1e+12
    %v335 = vmin.f32 %v319, 1e+12
    %v336 = vmin.f32 %v320, 1e+12
    %v337 = vmin.f32 %v321, 1e+12
    %v338 = vmin.f32 %v322, 1e+12
    %v339 = vmin.f32 %v323, 1e+12
    %v340 = vmin.f32 %v324, 1e+12
    %v341 = vmin.f32 %v325, 1e+12
    %v342 = vmin.f32 %v326, 1e+12
    %v343 = vmin.f32 %v327, 1e+12
    %v344 = vmin.f32 %v328, 1e+12
    %v345 = vmin.f32 %v329, 1e+12
    %v346 = vmin.f32 %v330, 1e+12
    %v347 = vmin.f32 %v331, 1e+12
    %v348 = vmin.f32 %v332, 1e+12
    %v349 = vmin.f32 %v333, 1e+12
    %v350 = vmul.f32 %v142, %v334
    %v351 = vmul.f32 %v143, %v335
    %v352 = vmul.f32 %v144, %v336
    %v353 = vmul.f32 %v145, %v337
    %v354 = vmul.f32 %v146, %v338
    %v355 = vmul.f32 %v147, %v339
    %v356 = vmul.f32 %v148, %v340
    %v357 = vmul.f32 %v149, %v341
    %v358 = vmul.f32 %v150, %v342
    %v359 = vmul.f32 %v151, %v343
    %v360 = vmul.f32 %v152, %v344
    %v361 = vmul.f32 %v153, %v345
    %v362 = vmul.f32 %v154, %v346
    %v363 = vmul.f32 %v155, %v347
    %v364 = vmul.f32 %v156, %v348
    %v365 = vmul.f32 %v157, %v349
    %v366 = vmul.f32 %v350, %v95
    %v367 = vmul.f32 %v351, %v97
    %v368 = vmul.f32 %v352, %v99
    %v369 = vmul.f32 %v353, %v101
    %v370 = vmul.f32 %v354, %v103
    %v371 = vmul.f32 %v355, %v105
    %v372 = vmul.f32 %v356, %v107
    %v373 = vmul.f32 %v357, %v109
    %v374 = vmul.f32 %v358, %v111
    %v375 = vmul.f32 %v359, %v113
    %v376 = vmul.f32 %v360, %v115
    %v377 = vmul.f32 %v361, %v117
    %v378 = vmul.f32 %v362, %v119
    %v379 = vmul.f32 %v363, %v121
    %v380 = vmul.f32 %v364, %v123
    %v381 = vmul.f32 %v365, %v125
    %v382 = vsub.f32 %v254, %v366
    %v383 = vsub.f32 %v255, %v367
    %v384 = vsub.f32 %v256, %v368
    %v385 = vsub.f32 %v257, %v369
    %v386 = vsub.f32 %v258, %v370
    %v387 = vsub.f32 %v259, %v371
    %v388 = vsub.f32 %v260, %v372
    %v389 = vsub.f32 %v261, %v373
    %v390 = vsub.f32 %v262, %v374
    %v391 = vsub.f32 %v263, %v375
    %v392 = vsub.f32 %v264, %v376
    %v393 = vsub.f32 %v265, %v377
    %v394 = vsub.f32 %v266, %v378
    %v395 = vsub.f32 %v267, %v379
    %v396 = vsub.f32 %v268, %v380
    %v397 = vsub.f32 %v269, %v381
    %v398 = vand.u32 2147483647, %v382
    %v399 = vand.u32 2147483647, %v383
    %v400 = vand.u32 2147483647, %v384
    %v401 = vand.u32 2147483647, %v385
    %v402 = vand.u32 2147483647, %v386
    %v403 = vand.u32 2147483647, %v387
    %v404 = vand.u32 2147483647, %v388
    %v405 = vand.u32 2147483647, %v389
    %v406 = vand.u32 2147483647, %v390
    %v407 = vand.u32 2147483647, %v391
    %v408 = vand.u32 2147483647, %v392
    %v409 = vand.u32 2147483647, %v393
    %v410 = vand.u32 2147483647, %v394
    %v411 = vand.u32 2147483647, %v395
    %v412 = vand.u32 2147483647, %v396
    %v413 = vand.u32 2147483647, %v397
    %414 = vadd.xlane.f32.xlu0 %v398
    %v415 = vpop.xlane.xlu0 %414
    %416 = vadd.xlane.f32.xlu0 %v399
    %v417 = vpop.xlane.xlu0 %416
    %418 = vadd.xlane.f32.xlu0 %v400
    %v419 = vpop.xlane.xlu0 %418
    %420 = vadd.xlane.f32.xlu0 %v401
    %v421 = vpop.xlane.xlu0 %420
    %422 = vadd.xlane.f32.xlu0 %v402
    %v423 = vpop.xlane.xlu0 %422
    %424 = vadd.xlane.f32.xlu0 %v403
    %v425 = vpop.xlane.xlu0 %424
    %426 = vadd.xlane.f32.xlu0 %v404
    %v427 = vpop.xlane.xlu0 %426
    %428 = vadd.xlane.f32.xlu0 %v405
    %v429 = vpop.xlane.xlu0 %428
    %430 = vadd.xlane.f32.xlu0 %v406
    %v431 = vpop.xlane.xlu0 %430
    %432 = vadd.xlane.f32.xlu0 %v407
    %v433 = vpop.xlane.xlu0 %432
    %434 = vadd.xlane.f32.xlu0 %v408
    %v435 = vpop.xlane.xlu0 %434
    %436 = vadd.xlane.f32.xlu0 %v409
    %v437 = vpop.xlane.xlu0 %436
    %438 = vadd.xlane.f32.xlu0 %v410
    %v439 = vpop.xlane.xlu0 %438
    %440 = vadd.xlane.f32.xlu0 %v411
    %v441 = vpop.xlane.xlu0 %440
    %442 = vadd.xlane.f32.xlu0 %v412
    %v443 = vpop.xlane.xlu0 %442
    %444 = vadd.xlane.f32.xlu0 %v413
    %v445 = vpop.xlane.xlu0 %444
    %v446 = vsub.f32 0.0, %v415
    %v447 = vsub.f32 0.0, %v417
    %v448 = vsub.f32 0.0, %v419
    %v449 = vsub.f32 0.0, %v421
    %v450 = vsub.f32 0.0, %v423
    %v451 = vsub.f32 0.0, %v425
    %v452 = vsub.f32 0.0, %v427
    %v453 = vsub.f32 0.0, %v429
    %v454 = vsub.f32 0.0, %v431
    %v455 = vsub.f32 0.0, %v433
    %v456 = vsub.f32 0.0, %v435
    %v457 = vsub.f32 0.0, %v437
    %v458 = vsub.f32 0.0, %v439
    %v459 = vsub.f32 0.0, %v441
    %v460 = vsub.f32 0.0, %v443
    %v461 = vsub.f32 0.0, %v445
    %v478 = vlaneseq
    %v479 = vand.u32 %v478, 127
    %v480 = vlaneseq
    %v481 = vshrl.u32 %v480, 7
    %v482 = vsub.s32 %v479, %v481
    %v483 = vrot.slane %v446, %v482
    %v484 = vadd.s32 %v479, 4294967288
    %v485 = vlaneseq
    %v486 = vshrl.u32 %v485, 7
    %v487 = vsub.s32 %v484, %v486
    %v488 = vrot.slane %v447, %v487
    %vm489 = vcmask 130112
    %v490 = vsel %vm489, %v488, %v483
    %v491 = vadd.s32 %v479, 4294967280
    %v492 = vlaneseq
    %v493 = vshrl.u32 %v492, 7
    %v494 = vsub.s32 %v491, %v493
    %v495 = vrot.slane %v448, %v494
    %vm496 = vcmask 195712
    %v497 = vsel %vm496, %v495, %v490
    %v498 = vadd.s32 %v479, 4294967272
    %v499 = vlaneseq
    %v500 = vshrl.u32 %v499, 7
    %v501 = vsub.s32 %v498, %v500
    %v502 = vrot.slane %v449, %v501
    %vm503 = vcmask 261312
    %v504 = vsel %vm503, %v502, %v497
    %v505 = vadd.s32 %v479, 4294967264
    %v506 = vlaneseq
    %v507 = vshrl.u32 %v506, 7
    %v508 = vsub.s32 %v505, %v507
    %v509 = vrot.slane %v450, %v508
    %vm510 = vcmask 326912
    %v511 = vsel %vm510, %v509, %v504
    %v512 = vadd.s32 %v479, 4294967256
    %v513 = vlaneseq
    %v514 = vshrl.u32 %v513, 7
    %v515 = vsub.s32 %v512, %v514
    %v516 = vrot.slane %v451, %v515
    %vm517 = vcmask 392512
    %v518 = vsel %vm517, %v516, %v511
    %v519 = vadd.s32 %v479, 4294967248
    %v520 = vlaneseq
    %v521 = vshrl.u32 %v520, 7
    %v522 = vsub.s32 %v519, %v521
    %v523 = vrot.slane %v452, %v522
    %vm524 = vcmask 458112
    %v525 = vsel %vm524, %v523, %v518
    %v526 = vadd.s32 %v479, 4294967240
    %v527 = vlaneseq
    %v528 = vshrl.u32 %v527, 7
    %v529 = vsub.s32 %v526, %v528
    %v530 = vrot.slane %v453, %v529
    %vm531 = vcmask 523712
    %v532 = vsel %vm531, %v530, %v525
    %v533 = vadd.s32 %v479, 4294967232
    %v534 = vlaneseq
    %v535 = vshrl.u32 %v534, 7
    %v536 = vsub.s32 %v533, %v535
    %v537 = vrot.slane %v454, %v536
    %vm538 = vcmask 589312
    %v539 = vsel %vm538, %v537, %v532
    %v540 = vadd.s32 %v479, 4294967224
    %v541 = vlaneseq
    %v542 = vshrl.u32 %v541, 7
    %v543 = vsub.s32 %v540, %v542
    %v544 = vrot.slane %v455, %v543
    %vm545 = vcmask 654912
    %v546 = vsel %vm545, %v544, %v539
    %v547 = vadd.s32 %v479, 4294967216
    %v548 = vlaneseq
    %v549 = vshrl.u32 %v548, 7
    %v550 = vsub.s32 %v547, %v549
    %v551 = vrot.slane %v456, %v550
    %vm552 = vcmask 720512
    %v553 = vsel %vm552, %v551, %v546
    %v554 = vadd.s32 %v479, 4294967208
    %v555 = vlaneseq
    %v556 = vshrl.u32 %v555, 7
    %v557 = vsub.s32 %v554, %v556
    %v558 = vrot.slane %v457, %v557
    %vm559 = vcmask 786112
    %v560 = vsel %vm559, %v558, %v553
    %v561 = vadd.s32 %v479, 4294967200
    %v562 = vlaneseq
    %v563 = vshrl.u32 %v562, 7
    %v564 = vsub.s32 %v561, %v563
    %v565 = vrot.slane %v458, %v564
    %vm566 = vcmask 851712
    %v567 = vsel %vm566, %v565, %v560
    %v568 = vadd.s32 %v479, 4294967192
    %v569 = vlaneseq
    %v570 = vshrl.u32 %v569, 7
    %v571 = vsub.s32 %v568, %v570
    %v572 = vrot.slane %v459, %v571
    %vm573 = vcmask 917312
    %v574 = vsel %vm573, %v572, %v567
    %v575 = vadd.s32 %v479, 4294967184
    %v576 = vlaneseq
    %v577 = vshrl.u32 %v576, 7
    %v578 = vsub.s32 %v575, %v577
    %v579 = vrot.slane %v460, %v578
    %vm580 = vcmask 982912
    %v581 = vsel %vm580, %v579, %v574
    %v582 = vadd.s32 %v479, 4294967176
    %v583 = vlaneseq
    %v584 = vshrl.u32 %v583, 7
    %v585 = vsub.s32 %v582, %v584
    %v586 = vrot.slane %v461, %v585
    %vm587 = vcmask 1048512
    %v588 = vsel %vm587, %v586, %v581
    %590 = vst [vmem:[#allocation10] sm:$0x1] %v588
    // Predicated region
    $region24: #{tpu_custom_call.1} parent=1 // pred_check
      _
    $region25: #{tpu_custom_call.1} parent=1 // pred_check_branch
      %592 = sbr.rel (0) target = $region27
    $region26: #{tpu_custom_call.1} parent=1 // pred_region
      %s594 = ssub.s32 16, 16
      %595 = vsyncadd [#allocation11], %s594
      %s597 = sshll.u32 [#allocation10], 4
      %s598 = int_to_ptr.vmem [resolvable:$true] %s597
      %600 = dma.vmem_to_hbm [thread:$0]  %s598, 16, %s5, [#allocation11]
    $region27: #{tpu_custom_call.1} parent=1 // pred_fallthru
      _
    // Predicated region
    $region28: #{tpu_custom_call.1} parent=1 // pred_check
      _
    $region29: #{tpu_custom_call.1} parent=1 // pred_check_branch
      %602 = sbr.rel (0) target = $region31
    $region30: #{tpu_custom_call.1} parent=1 // pred_region
      %603 = dma.done [#allocation11], 16
    $region31: #{tpu_custom_call.1} parent=1 // pred_fallthru
      _
    %604 = vsyncpa [#allocation11], 1
  %605 = vsyncmov [#allocation5]
  %s606 = vpop.sfrf %605
  %p607 = scmp.eq.s32.totalorder %s606, 0
  %p608 = pneg %p607
  %610 = shalt.err (%p608)
  %s611 = scalar_lea.sflag [#allocation5], 1
  %612 = vsyncmov %s611
  %s613 = vpop.sfrf %612
  %p614 = scmp.eq.s32.totalorder %s613, 0
  %p615 = pneg %p614
  %617 = shalt.err (%p615)
  %s618 = scalar_lea.sflag [#allocation5], 2
  %619 = vsyncmov %s618
  %s620 = vpop.sfrf %619
  %p621 = scmp.eq.s32.totalorder %s620, 0
  %p622 = pneg %p621
  %624 = shalt.err (%p622)

</llo_original>
